<compile_context>
chip_gen: v6e
topology: v6e:2x2x1
jax: 0.10.0
libtpu: 0.0.40
codegen_flags: <defaults>
</compile_context>

<pallas_src>
import functools

import jax
import jax.numpy as jnp
from jax.experimental import pallas as pl
from jax.experimental.pallas import tpu as pltpu

_EPS = 1e-5


def _context_kernel(x_ref, w_ref, v_ref, avg_ref, *, d_in, hid, cvec):
    x = x_ref[...]                                   # (B, d_in)

    # Static, lane-dense slices out of the packed parameter slabs.
    w1 = w_ref[0:d_in, 0:hid]                        # (d_in, hid)
    w2 = w_ref[d_in:d_in + hid, 0:hid]               # (hid, hid)
    w3 = w_ref[d_in + hid:d_in + 2 * hid, 0:cvec]    # (hid, cvec)

    b1 = v_ref[0:1, 0:hid]
    g1 = v_ref[1:2, 0:hid]
    bb1 = v_ref[2:3, 0:hid]
    b2 = v_ref[3:4, 0:hid]
    g2 = v_ref[4:5, 0:hid]
    bb2 = v_ref[5:6, 0:hid]
    b3 = v_ref[6:7, 0:cvec]

    inv_b = 1.0 / x.shape[0]                         # static python float

    def bn_relu(h, g, bb):
        # Single-pass batch statistics: one sweep producing sum and sum-of-squares.
        s1 = jnp.sum(h, axis=0, keepdims=True)
        s2 = jnp.sum(h * h, axis=0, keepdims=True)
        mu = s1 * inv_b
        var = jnp.maximum(s2 * inv_b - mu * mu, 0.0)  # biased var (torch BN), clamp >= 0
        scale = g * jax.lax.rsqrt(var + _EPS)         # EUP rsqrt
        shift = bb - mu * scale
        return jnp.maximum(h * scale + shift, 0.0)

    h = jnp.dot(x, w1, preferred_element_type=jnp.float32) + b1
    h = bn_relu(h, g1, bb1)
    h = jnp.dot(h, w2, preferred_element_type=jnp.float32) + b2
    h = bn_relu(h, g2, bb2)
    cv = jnp.dot(h, w3, preferred_element_type=jnp.float32) + b3

    avg_ref[...] = jnp.mean(cv, axis=0, keepdims=True)   # (1, cvec)


def pack_params(params, d_in, hid, cvec):
    """Pack the 11 tiny parameter arrays into two VMEM-friendly slabs."""
    wmax = max(hid, cvec)
    # Weight slab: stacked along sublanes (row offsets), lane-dense columns.
    w_slab = jnp.zeros((d_in + 2 * hid, wmax), jnp.float32)
    w_slab = w_slab.at[0:d_in, 0:hid].set(params["w1"])
    w_slab = w_slab.at[d_in:d_in + hid, 0:hid].set(params["w2"])
    w_slab = w_slab.at[d_in + hid:d_in + 2 * hid, 0:cvec].set(params["w3"])
    # Vector slab: 8 rows (sublane-aligned), one per bias / BN parameter.
    v_slab = jnp.zeros((8, wmax), jnp.float32)
    v_slab = v_slab.at[0, 0:hid].set(params["b1"][0])
    v_slab = v_slab.at[1, 0:hid].set(params["g1"][0])
    v_slab = v_slab.at[2, 0:hid].set(params["bb1"][0])
    v_slab = v_slab.at[3, 0:hid].set(params["b2"][0])
    v_slab = v_slab.at[4, 0:hid].set(params["g2"][0])
    v_slab = v_slab.at[5, 0:hid].set(params["bb2"][0])
    v_slab = v_slab.at[6, 0:cvec].set(params["b3"][0])
    return w_slab, v_slab


def context_forward(x, w_slab, v_slab, *, d_in, hid, cvec, num_features):
    """Returns (avg_context_vector [C], pred_vec [B, num_features + D_in])."""
    B, D = x.shape
    assert D == d_in
    # torch's .expand on a 1-D [C] tensor to (B, num_features) requires num_features == C
    assert num_features == cvec, "expand() semantics require num_features == context_vector_size"

    vmem = pl.BlockSpec(memory_space=pltpu.MemorySpace.VMEM)
    cost = pl.CostEstimate(
        flops=2 * B * (d_in * hid + hid * hid + hid * cvec),
        transcendentals=2 * hid,
        bytes_accessed=int(x.nbytes + w_slab.nbytes + v_slab.nbytes + 4 * cvec),
    )
    avg2d = pl.pallas_call(
        functools.partial(_context_kernel, d_in=d_in, hid=hid, cvec=cvec),
        out_shape=jax.ShapeDtypeStruct((1, cvec), jnp.float32),
        in_specs=[vmem, vmem, vmem],
        out_specs=vmem,
        cost_estimate=cost,
    )(x, w_slab, v_slab)

    # Broadcast + concat done outside the kernel (XLA fuses; avoids masked lane-offset store
    # and the pure pass-through HBM write of x).
    pred_vec = jnp.concatenate(
        [jnp.broadcast_to(avg2d, (B, num_features)), x], axis=1)
    return avg2d[0], pred_vec


def init_params(key, input_size, context_vector_size, context_hidden_size):
    """Deterministic synthetic parameters (shapes match the PyTorch module)."""
    ks = jax.random.split(key, 6)

    def lin(kw, kb, fan_in, fan_out):
        bound = 1.0 / jnp.sqrt(fan_in)
        w = jax.random.uniform(kw, (fan_in, fan_out), jnp.float32, -bound, bound)
        b = jax.random.uniform(kb, (1, fan_out), jnp.float32, -bound, bound)
        return w, b

    w1, b1 = lin(ks[0], ks[1], input_size, context_hidden_size)
    w2, b2 = lin(ks[2], ks[3], context_hidden_size, context_hidden_size)
    w3, b3 = lin(ks[4], ks[5], context_hidden_size, context_vector_size)
    # BatchNorm1d affine params (PyTorch default init: weight=1, bias=0)
    g1 = jnp.ones((1, context_hidden_size), jnp.float32)
    bb1 = jnp.zeros((1, context_hidden_size), jnp.float32)
    g2 = jnp.ones((1, context_hidden_size), jnp.float32)
    bb2 = jnp.zeros((1, context_hidden_size), jnp.float32)
    return dict(w1=w1, b1=b1, g1=g1, bb1=bb1,
                w2=w2, b2=b2, g2=g2, bb2=bb2,
                w3=w3, b3=b3)


def _reference_forward(x, p, num_features):
    """Pure-JAX reference mirroring the PyTorch forward (training-mode BN)."""
    def bn_relu(h, g, b):
        mu = jnp.mean(h, axis=0, keepdims=True)
        var = jnp.mean((h - mu) ** 2, axis=0, keepdims=True)
        return jnp.maximum((h - mu) / jnp.sqrt(var + _EPS) * g + b, 0.0)

    h = bn_relu(x @ p["w1"] + p["b1"], p["g1"], p["bb1"])
    h = bn_relu(h @ p["w2"] + p["b2"], p["g2"], p["bb2"])
    cv = h @ p["w3"] + p["b3"]
    avg = jnp.mean(cv, axis=0)
    pred = jnp.concatenate(
        [jnp.broadcast_to(avg[None, :], (x.shape[0], num_features)), x], axis=1)
    return avg, pred


if __name__ == "__main__":
    # Small shapes: batch=8, input_size=16, hidden=32, context_vector_size=16
    B, INPUT_SIZE, CTX_VEC, CTX_HID = 8, 16, 16, 32
    NUM_FEATURES = CTX_VEC

    key = jax.random.PRNGKey(0)
    kx, kp = jax.random.split(key)
    x = jax.random.normal(kx, (B, INPUT_SIZE), jnp.float32)
    params = init_params(kp, INPUT_SIZE, CTX_VEC, CTX_HID)
    w_slab, v_slab = pack_params(params, INPUT_SIZE, CTX_HID, CTX_VEC)

    avg_ctx, pred_vec = context_forward(
        x, w_slab, v_slab,
        d_in=INPUT_SIZE, hid=CTX_HID, cvec=CTX_VEC, num_features=NUM_FEATURES)
    jax.block_until_ready((avg_ctx, pred_vec))

    # Sanity check against the pure-JAX reference
    avg_ref, pred_ref = _reference_forward(x, params, NUM_FEATURES)
    assert avg_ctx.shape == (CTX_VEC,)
    assert pred_vec.shape == (B, NUM_FEATURES + INPUT_SIZE)
    assert jnp.allclose(avg_ctx, avg_ref, atol=1e-4, rtol=1e-4)
    assert jnp.allclose(pred_vec, pred_ref, atol=1e-4, rtol=1e-4)

    print("KERNEL_OK")
</pallas_src>

<mosaic_0001>
module attributes {stable_mosaic.version = 11 : i64} {
  func.func @_context_kernel(%arg0: memref<8x16xf32, #tpu.memory_space<vmem>>, %arg1: memref<80x32xf32, #tpu.memory_space<vmem>>, %arg2: memref<8x32xf32, #tpu.memory_space<vmem>>, %arg3: memref<1x16xf32, #tpu.memory_space<vmem>>) attributes {dimension_semantics = [], scalar_prefetch = 0 : i64, scratch_operands = 0 : i64, tpu.core_type = #tpu.core_type<tc>} {
    %c0 = arith.constant 0 : index
    %c0_0 = arith.constant 0 : index
    %0 = vector.load %arg0[%c0, %c0_0] : memref<8x16xf32, #tpu.memory_space<vmem>>, vector<8x16xf32>
    %c0_1 = arith.constant 0 : index
    %c0_2 = arith.constant 0 : index
    %1 = vector.load %arg1[%c0_1, %c0_2] : memref<80x32xf32, #tpu.memory_space<vmem>>, vector<16x32xf32>
    %c16 = arith.constant 16 : index
    %c0_3 = arith.constant 0 : index
    %2 = vector.load %arg1[%c16, %c0_3] : memref<80x32xf32, #tpu.memory_space<vmem>>, vector<32x32xf32>
    %c48 = arith.constant 48 : index
    %c0_4 = arith.constant 0 : index
    %3 = vector.load %arg1[%c48, %c0_4] : memref<80x32xf32, #tpu.memory_space<vmem>>, vector<32x16xf32>
    %c0_5 = arith.constant 0 : index
    %c0_6 = arith.constant 0 : index
    %4 = vector.load %arg2[%c0_5, %c0_6] : memref<8x32xf32, #tpu.memory_space<vmem>>, vector<1x32xf32>
    %c1 = arith.constant 1 : index
    %c0_7 = arith.constant 0 : index
    %5 = vector.load %arg2[%c1, %c0_7] : memref<8x32xf32, #tpu.memory_space<vmem>>, vector<1x32xf32>
    %c2 = arith.constant 2 : index
    %c0_8 = arith.constant 0 : index
    %6 = vector.load %arg2[%c2, %c0_8] : memref<8x32xf32, #tpu.memory_space<vmem>>, vector<1x32xf32>
    %c3 = arith.constant 3 : index
    %c0_9 = arith.constant 0 : index
    %7 = vector.load %arg2[%c3, %c0_9] : memref<8x32xf32, #tpu.memory_space<vmem>>, vector<1x32xf32>
    %c4 = arith.constant 4 : index
    %c0_10 = arith.constant 0 : index
    %8 = vector.load %arg2[%c4, %c0_10] : memref<8x32xf32, #tpu.memory_space<vmem>>, vector<1x32xf32>
    %c5 = arith.constant 5 : index
    %c0_11 = arith.constant 0 : index
    %9 = vector.load %arg2[%c5, %c0_11] : memref<8x32xf32, #tpu.memory_space<vmem>>, vector<1x32xf32>
    %c6 = arith.constant 6 : index
    %c0_12 = arith.constant 0 : index
    %10 = vector.load %arg2[%c6, %c0_12] : memref<8x32xf32, #tpu.memory_space<vmem>>, vector<1x16xf32>
    %cst = arith.constant dense<0.000000e+00> : vector<8x32xf32>
    %11 = tpu.matmul %0, %1, %cst {dimension_numbers = #tpu.dot_dimension_numbers<[1], [0], [0], [1], [0, 0, 1, 1], [], []>} : vector<8x16xf32>, vector<16x32xf32>, vector<8x32xf32> -> vector<8x32xf32>
    %12 = vector.broadcast %4 : vector<1x32xf32> to vector<8x32xf32>
    %13 = arith.addf %11, %12 : vector<8x32xf32>
    %cst_13 = arith.constant dense<0.000000e+00> : vector<32xf32>
    %14 = vector.multi_reduction <add>, %13, %cst_13 [0] : vector<8x32xf32> to vector<32xf32>
    %15 = vector.shape_cast %14 : vector<32xf32> to vector<1x32xf32>
    %16 = arith.mulf %13, %13 : vector<8x32xf32>
    %cst_14 = arith.constant dense<0.000000e+00> : vector<32xf32>
    %17 = vector.multi_reduction <add>, %16, %cst_14 [0] : vector<8x32xf32> to vector<32xf32>
    %18 = vector.shape_cast %17 : vector<32xf32> to vector<1x32xf32>
    %cst_15 = arith.constant 1.250000e-01 : f32
    %19 = vector.broadcast %cst_15 : f32 to vector<1x32xf32>
    %20 = arith.mulf %15, %19 : vector<1x32xf32>
    %cst_16 = arith.constant 1.250000e-01 : f32
    %21 = vector.broadcast %cst_16 : f32 to vector<1x32xf32>
    %22 = arith.mulf %18, %21 : vector<1x32xf32>
    %23 = arith.mulf %20, %20 : vector<1x32xf32>
    %24 = arith.subf %22, %23 : vector<1x32xf32>
    %cst_17 = arith.constant 0.000000e+00 : f32
    %25 = vector.broadcast %cst_17 : f32 to vector<1x32xf32>
    %26 = arith.maximumf %24, %25 : vector<1x32xf32>
    %cst_18 = arith.constant 9.99999974E-6 : f32
    %27 = vector.broadcast %cst_18 : f32 to vector<1x32xf32>
    %28 = arith.addf %26, %27 : vector<1x32xf32>
    %29 = math.rsqrt %28 : vector<1x32xf32>
    %30 = arith.mulf %5, %29 : vector<1x32xf32>
    %31 = arith.mulf %20, %30 : vector<1x32xf32>
    %32 = arith.subf %6, %31 : vector<1x32xf32>
    %33 = vector.broadcast %30 : vector<1x32xf32> to vector<8x32xf32>
    %34 = arith.mulf %13, %33 : vector<8x32xf32>
    %35 = vector.broadcast %32 : vector<1x32xf32> to vector<8x32xf32>
    %36 = arith.addf %34, %35 : vector<8x32xf32>
    %cst_19 = arith.constant 0.000000e+00 : f32
    %37 = vector.broadcast %cst_19 : f32 to vector<8x32xf32>
    %38 = arith.maximumf %36, %37 : vector<8x32xf32>
    %cst_20 = arith.constant dense<0.000000e+00> : vector<8x32xf32>
    %39 = tpu.matmul %38, %2, %cst_20 {dimension_numbers = #tpu.dot_dimension_numbers<[1], [0], [0], [1], [0, 0, 1, 1], [], []>} : vector<8x32xf32>, vector<32x32xf32>, vector<8x32xf32> -> vector<8x32xf32>
    %40 = vector.broadcast %7 : vector<1x32xf32> to vector<8x32xf32>
    %41 = arith.addf %39, %40 : vector<8x32xf32>
    %cst_21 = arith.constant dense<0.000000e+00> : vector<32xf32>
    %42 = vector.multi_reduction <add>, %41, %cst_21 [0] : vector<8x32xf32> to vector<32xf32>
    %43 = vector.shape_cast %42 : vector<32xf32> to vector<1x32xf32>
    %44 = arith.mulf %41, %41 : vector<8x32xf32>
    %cst_22 = arith.constant dense<0.000000e+00> : vector<32xf32>
    %45 = vector.multi_reduction <add>, %44, %cst_22 [0] : vector<8x32xf32> to vector<32xf32>
    %46 = vector.shape_cast %45 : vector<32xf32> to vector<1x32xf32>
    %cst_23 = arith.constant 1.250000e-01 : f32
    %47 = vector.broadcast %cst_23 : f32 to vector<1x32xf32>
    %48 = arith.mulf %43, %47 : vector<1x32xf32>
    %cst_24 = arith.constant 1.250000e-01 : f32
    %49 = vector.broadcast %cst_24 : f32 to vector<1x32xf32>
    %50 = arith.mulf %46, %49 : vector<1x32xf32>
    %51 = arith.mulf %48, %48 : vector<1x32xf32>
    %52 = arith.subf %50, %51 : vector<1x32xf32>
    %cst_25 = arith.constant 0.000000e+00 : f32
    %53 = vector.broadcast %cst_25 : f32 to vector<1x32xf32>
    %54 = arith.maximumf %52, %53 : vector<1x32xf32>
    %cst_26 = arith.constant 9.99999974E-6 : f32
    %55 = vector.broadcast %cst_26 : f32 to vector<1x32xf32>
    %56 = arith.addf %54, %55 : vector<1x32xf32>
    %57 = math.rsqrt %56 : vector<1x32xf32>
    %58 = arith.mulf %8, %57 : vector<1x32xf32>
    %59 = arith.mulf %48, %58 : vector<1x32xf32>
    %60 = arith.subf %9, %59 : vector<1x32xf32>
    %61 = vector.broadcast %58 : vector<1x32xf32> to vector<8x32xf32>
    %62 = arith.mulf %41, %61 : vector<8x32xf32>
    %63 = vector.broadcast %60 : vector<1x32xf32> to vector<8x32xf32>
    %64 = arith.addf %62, %63 : vector<8x32xf32>
    %cst_27 = arith.constant 0.000000e+00 : f32
    %65 = vector.broadcast %cst_27 : f32 to vector<8x32xf32>
    %66 = arith.maximumf %64, %65 : vector<8x32xf32>
    %cst_28 = arith.constant dense<0.000000e+00> : vector<8x16xf32>
    %67 = tpu.matmul %66, %3, %cst_28 {dimension_numbers = #tpu.dot_dimension_numbers<[1], [0], [0], [1], [0, 0, 1, 1], [], []>} : vector<8x32xf32>, vector<32x16xf32>, vector<8x16xf32> -> vector<8x16xf32>
    %68 = vector.broadcast %10 : vector<1x16xf32> to vector<8x16xf32>
    %69 = arith.addf %67, %68 : vector<8x16xf32>
    %cst_29 = arith.constant dense<0.000000e+00> : vector<16xf32>
    %70 = vector.multi_reduction <add>, %69, %cst_29 [0] : vector<8x16xf32> to vector<16xf32>
    %71 = vector.shape_cast %70 : vector<16xf32> to vector<1x16xf32>
    %cst_30 = arith.constant 8.000000e+00 : f32
    %72 = vector.broadcast %cst_30 : f32 to vector<1x16xf32>
    %73 = arith.divf %71, %72 : vector<1x16xf32>
    %c0_31 = arith.constant 0 : index
    %c0_32 = arith.constant 0 : index
    %74 = vector.load %arg3[%c0_31, %c0_32] : memref<1x16xf32, #tpu.memory_space<vmem>>, vector<1x16xf32>
    tpu.vector_store %arg3[%c0_31, %c0_32], %73 {strides = array<i32>} : memref<1x16xf32, #tpu.memory_space<vmem>>, vector<1x16xf32>,
    return
  }
}

</mosaic_0001>

<llo_original>
// kernel: tpu_custom_call.1
$region0: #{tpu_custom_call.1}
  #allocation0 [shape = 'u32[]', space=smem, size = 0x4, offset = 0x4, fixed_abs, tag = 'smem constant byte address 0x4 - core index']
  #allocation1 [shape = 'u32[144,128]{1,0:T(1,128)}', space=vmem, size = 0x12000, scoped, tag = 'internal scratch']
  %s0 = inlined_call_operand.vmem [shape: f32[8,16], index: 0, kind: input, shape index: {}]
  %s1 = inlined_call_operand.vmem [shape: f32[80,32], index: 1, kind: input, shape index: {}]
  %s2 = inlined_call_operand.vmem [shape: f32[8,32], index: 2, kind: input, shape index: {}]
  %s3 = inlined_call_operand.hbm [shape: f32[1,16], index: 3, kind: output, shape index: {}]
  %s4 = sld [smem:[#allocation0]]
  $region22: #{tpu_custom_call.1} parent=0
    _
  %s6 = ssub.s32 1, %s4
  %s7 = scalar_select 0, %s6, %s4
  $region1: #{tpu_custom_call.1} parent=0
    #allocation2 [shape = 'u8[512]{0}', space=vmem, size = 0x400, scoped, tag = 'output window, operand 0, single buffered']
    #allocation3 [shape = 's32[1]{0}', space=sflag, size = 0x4, scoped, tag = 'scoped memory for tpu_custom_call.1']
    %8 = vsyncpa [#allocation3], 0
    // Predicated region
    $region2: #{tpu_custom_call.1} parent=1 // pred_check
      _
    $region3: #{tpu_custom_call.1} parent=1 // pred_check_branch
      %10 = sbr.rel (0) target = $region5
    $region4: #{tpu_custom_call.1} parent=1 // pred_region
      _
    $region5: #{tpu_custom_call.1} parent=1 // pred_fallthru
      _
    // Predicated region
    $region6: #{tpu_custom_call.1} parent=1 // pred_check
      _
    $region7: #{tpu_custom_call.1} parent=1 // pred_check_branch
      %12 = sbr.rel (0) target = $region9
    $region8: #{tpu_custom_call.1} parent=1 // pred_region
      _
    $region9: #{tpu_custom_call.1} parent=1 // pred_fallthru
      _
    // Predicated region
    $region10: #{tpu_custom_call.1} parent=1 // pred_check
      _
    $region11: #{tpu_custom_call.1} parent=1 // pred_check_branch
      %14 = sbr.rel (0) target = $region13
    $region12: #{tpu_custom_call.1} parent=1 // pred_region
      _
    $region13: #{tpu_custom_call.1} parent=1 // pred_fallthru
      _
    %v15 = vld [vmem:[%s0] sm:$0xff]
    %v16 = vld [vmem:[%s1] sm:$0xff]
    %v17 = vld [vmem:[%s1 + $0x8] sm:$0xff]
    %v18 = vld [vmem:[%s1 + $0x10] sm:$0xff]
    %v19 = vld [vmem:[%s1 + $0x18] sm:$0xff]
    %v20 = vld [vmem:[%s1 + $0x20] sm:$0xff]
    %v21 = vld [vmem:[%s1 + $0x28] sm:$0xff]
    %v22 = vld [vmem:[%s1 + $0x30] sm:$0xff]
    %v23 = vld [vmem:[%s1 + $0x38] sm:$0xff]
    %v24 = vld [vmem:[%s1 + $0x40] sm:$0xff]
    %v25 = vld [vmem:[%s1 + $0x48] sm:$0xff]
    %v26 = vld [vmem:[%s2] sm:$0x1]
    %v27 = vld [vmem:[%s2 + $0x1] sm:$0x1]
    %v28 = vld [vmem:[%s2 + $0x2] sm:$0x1]
    %v29 = vld [vmem:[%s2 + $0x3] sm:$0x1]
    %v30 = vld [vmem:[%s2 + $0x4] sm:$0x1]
    %v31 = vld [vmem:[%s2 + $0x5] sm:$0x1]
    %v32 = vld [vmem:[%s2 + $0x6] sm:$0x1]
    %v33 = vlaneseq
    %v34 = vshrl.u32 %v33, 7
    %v35 = vsub.s32 0, %v34
    %v36 = vrot.slane %v26, %v35
    %vm37 = vcmask 130048
    %v39 = vsel %vm37, %v15, 0
    %41 = vmatprep.subr.mxu0 0.0
    %42 = vmatpush1.msra.mxu0 0.0
    %43 = vmatprep.subr.mxu0 0.0
    %44 = vmatpush1.msra.mxu0 0.0
    %45 = vmatprep.subr.mxu0 0.0
    %46 = vmatpush1.msra.mxu0 0.0
    %47 = vmatprep.subr.mxu0 0.0
    %48 = vmatpush1.msra.mxu0 0.0
    %49 = vmatprep.subr.mxu0 0.0
    %50 = vmatpush1.msra.mxu0 0.0
    %51 = vmatprep.subr.mxu0 0.0
    %52 = vmatpush1.msra.mxu0 0.0
    %53 = vmatprep.subr.mxu0 0.0
    %54 = vmatpush1.msra.mxu0 0.0
    %55 = vmatprep.subr.mxu0 0.0
    %56 = vmatpush1.msra.mxu0 0.0
    %57 = vmatprep.subr.mxu0 0.0
    %58 = vmatpush1.msra.mxu0 0.0
    %59 = vmatprep.subr.mxu0 0.0
    %60 = vmatpush1.msra.mxu0 0.0
    %61 = vmatprep.subr.mxu0 0.0
    %62 = vmatpush1.msra.mxu0 0.0
    %63 = vmatprep.subr.mxu0 0.0
    %64 = vmatpush1.msra.mxu0 0.0
    %65 = vmatprep.subr.mxu0 0.0
    %66 = vmatpush1.msra.mxu0 0.0
    %67 = vmatprep.subr.mxu0 0.0
    %68 = vmatpush1.msra.mxu0 0.0
    %69 = vmatprep.subr.mxu0 0.0
    %70 = vmatpush1.msra.mxu0 %v17
    %71 = vmatprep.subr.mxu0 0.0
    %72 = vmatpush1.msra.mxu0 %v16
    %73 = vmatprep.subr.mxu0 0.0
    %74 = vmatpush2.msra.mxu0 0.0
    %75 = vmatprep.subr.mxu0 0.0
    %76 = vmatpush2.msra.mxu0 0.0
    %77 = vmatprep.subr.mxu0 0.0
    %78 = vmatpush2.msra.mxu0 0.0
    %79 = vmatprep.subr.mxu0 0.0
    %80 = vmatpush2.msra.mxu0 0.0
    %81 = vmatprep.subr.mxu0 0.0
    %82 = vmatpush2.msra.mxu0 0.0
    %83 = vmatprep.subr.mxu0 0.0
    %84 = vmatpush2.msra.mxu0 0.0
    %85 = vmatprep.subr.mxu0 0.0
    %86 = vmatpush2.msra.mxu0 0.0
    %87 = vmatprep.subr.mxu0 0.0
    %88 = vmatpush2.msra.mxu0 0.0
    %89 = vmatprep.subr.mxu0 0.0
    %90 = vmatpush2.msra.mxu0 0.0
    %91 = vmatprep.subr.mxu0 0.0
    %92 = vmatpush2.msra.mxu0 0.0
    %93 = vmatprep.subr.mxu0 0.0
    %94 = vmatpush2.msra.mxu0 0.0
    %95 = vmatprep.subr.mxu0 0.0
    %96 = vmatpush2.msra.mxu0 0.0
    %97 = vmatprep.subr.mxu0 0.0
    %98 = vmatpush2.msra.mxu0 0.0
    %99 = vmatprep.subr.mxu0 0.0
    %100 = vmatpush2.msra.mxu0 0.0
    %101 = vmatprep.subr.mxu0 0.0
    %102 = vmatpush2.msra.mxu0 0.0
    %103 = vmatprep.subr.mxu0 0.0
    %104 = vmatpush2.msra.mxu0 0.0
    %105 = vmatprep.mubr.f32.mxu0 0.0
    %106 = vmatmul.mubr.f32.gmra.mxu0 %v39
    %v107 = vpop.f32.mrf.mxu0
    %v108 = vadd.f32 %v36, %v107
    %v109 = vpop.f32.mrf.mxu0
    %110 = vdwg.mxu0
    %vm111 = vcmask 261120
    %v112 = vsel %vm111, %v108, 0.0
    %v113 = vrot.slane %v112, 4
    %v114 = vadd.f32 %v112, %v113
    %v115 = vrot.slane %v114, 2
    %v116 = vadd.f32 %v114, %v115
    %v117 = vrot.slane %v116, 1
    %v118 = vadd.f32 %v116, %v117
    %v119 = vmul.f32 %v108, %v108
    %v120 = vsel %vm111, %v119, 0.0
    %v121 = vrot.slane %v120, 4
    %v122 = vadd.f32 %v120, %v121
    %v123 = vrot.slane %v122, 2
    %v124 = vadd.f32 %v122, %v123
    %v125 = vrot.slane %v124, 1
    %v126 = vadd.f32 %v124, %v125
    %v127 = vmul.f32 %v118, 0.125
    %v128 = vmul.f32 %v126, 0.125
    %v129 = vmul.f32 %v127, %v127
    %v130 = vsub.f32 %v128, %v129
    %v131 = vmax.f32 %v130, 0.0
    %v132 = vadd.f32 %v131, 1e-05
    %v133 = vrsqrt.pop %v132
    %v134 = vmul.f32 %v27, %v133
    %v135 = vmul.f32 %v127, %v134
    %v136 = vsub.f32 %v28, %v135
    %v137 = vlaneseq
    %v138 = vshrl.u32 %v137, 7
    %v139 = vsub.s32 0, %v138
    %v140 = vrot.slane %v134, %v139
    %v141 = vmul.f32 %v108, %v140
    %v142 = vlaneseq
    %v143 = vshrl.u32 %v142, 7
    %v144 = vsub.s32 0, %v143
    %v145 = vrot.slane %v136, %v144
    %v146 = vadd.f32 %v141, %v145
    %v147 = vmax.f32 %v146, 0.0
    %v148 = vlaneseq
    %v149 = vshrl.u32 %v148, 7
    %v150 = vsub.s32 0, %v149
    %v151 = vrot.slane %v29, %v150
    %v153 = vsel %vm111, %v147, 0
    %155 = vmatprep.subr.mxu0 0.0
    %156 = vmatpush1.msra.mxu0 0.0
    %157 = vmatprep.subr.mxu0 0.0
    %158 = vmatpush1.msra.mxu0 0.0
    %159 = vmatprep.subr.mxu0 0.0
    %160 = vmatpush1.msra.mxu0 0.0
    %161 = vmatprep.subr.mxu0 0.0
    %162 = vmatpush1.msra.mxu0 0.0
    %163 = vmatprep.subr.mxu0 0.0
    %164 = vmatpush1.msra.mxu0 0.0
    %165 = vmatprep.subr.mxu0 0.0
    %166 = vmatpush1.msra.mxu0 0.0
    %167 = vmatprep.subr.mxu0 0.0
    %168 = vmatpush1.msra.mxu0 0.0
    %169 = vmatprep.subr.mxu0 0.0
    %170 = vmatpush1.msra.mxu0 0.0
    %171 = vmatprep.subr.mxu0 0.0
    %172 = vmatpush1.msra.mxu0 0.0
    %173 = vmatprep.subr.mxu0 0.0
    %174 = vmatpush1.msra.mxu0 0.0
    %175 = vmatprep.subr.mxu0 0.0
    %176 = vmatpush1.msra.mxu0 0.0
    %177 = vmatprep.subr.mxu0 0.0
    %178 = vmatpush1.msra.mxu0 0.0
    %179 = vmatprep.subr.mxu0 0.0
    %180 = vmatpush1.msra.mxu0 %v21
    %181 = vmatprep.subr.mxu0 0.0
    %182 = vmatpush1.msra.mxu0 %v20
    %183 = vmatprep.subr.mxu0 0.0
    %184 = vmatpush1.msra.mxu0 %v19
    %185 = vmatprep.subr.mxu0 0.0
    %186 = vmatpush1.msra.mxu0 %v18
    %187 = vmatprep.subr.mxu0 0.0
    %188 = vmatpush2.msra.mxu0 0.0
    %189 = vmatprep.subr.mxu0 0.0
    %190 = vmatpush2.msra.mxu0 0.0
    %191 = vmatprep.subr.mxu0 0.0
    %192 = vmatpush2.msra.mxu0 0.0
    %193 = vmatprep.subr.mxu0 0.0
    %194 = vmatpush2.msra.mxu0 0.0
    %195 = vmatprep.subr.mxu0 0.0
    %196 = vmatpush2.msra.mxu0 0.0
    %197 = vmatprep.subr.mxu0 0.0
    %198 = vmatpush2.msra.mxu0 0.0
    %199 = vmatprep.subr.mxu0 0.0
    %200 = vmatpush2.msra.mxu0 0.0
    %201 = vmatprep.subr.mxu0 0.0
    %202 = vmatpush2.msra.mxu0 0.0
    %203 = vmatprep.subr.mxu0 0.0
    %204 = vmatpush2.msra.mxu0 0.0
    %205 = vmatprep.subr.mxu0 0.0
    %206 = vmatpush2.msra.mxu0 0.0
    %207 = vmatprep.subr.mxu0 0.0
    %208 = vmatpush2.msra.mxu0 0.0
    %209 = vmatprep.subr.mxu0 0.0
    %210 = vmatpush2.msra.mxu0 0.0
    %211 = vmatprep.subr.mxu0 0.0
    %212 = vmatpush2.msra.mxu0 0.0
    %213 = vmatprep.subr.mxu0 0.0
    %214 = vmatpush2.msra.mxu0 0.0
    %215 = vmatprep.subr.mxu0 0.0
    %216 = vmatpush2.msra.mxu0 0.0
    %217 = vmatprep.subr.mxu0 0.0
    %218 = vmatpush2.msra.mxu0 0.0
    %219 = vmatprep.mubr.f32.mxu0 0.0
    %220 = vmatmul.mubr.f32.gmra.mxu0 %v153
    %v221 = vpop.f32.mrf.mxu0
    %v222 = vadd.f32 %v151, %v221
    %v223 = vpop.f32.mrf.mxu0
    %224 = vdwg.mxu0
    %v225 = vsel %vm111, %v222, 0.0
    %v226 = vrot.slane %v225, 4
    %v227 = vadd.f32 %v225, %v226
    %v228 = vrot.slane %v227, 2
    %v229 = vadd.f32 %v227, %v228
    %v230 = vrot.slane %v229, 1
    %v231 = vadd.f32 %v229, %v230
    %v232 = vmul.f32 %v222, %v222
    %v233 = vsel %vm111, %v232, 0.0
    %v234 = vrot.slane %v233, 4
    %v235 = vadd.f32 %v233, %v234
    %v236 = vrot.slane %v235, 2
    %v237 = vadd.f32 %v235, %v236
    %v238 = vrot.slane %v237, 1
    %v239 = vadd.f32 %v237, %v238
    %v240 = vmul.f32 %v231, 0.125
    %v241 = vmul.f32 %v239, 0.125
    %v242 = vmul.f32 %v240, %v240
    %v243 = vsub.f32 %v241, %v242
    %v244 = vmax.f32 %v243, 0.0
    %v245 = vadd.f32 %v244, 1e-05
    %v246 = vrsqrt.pop %v245
    %v247 = vmul.f32 %v30, %v246
    %v248 = vmul.f32 %v240, %v247
    %v249 = vsub.f32 %v31, %v248
    %v250 = vlaneseq
    %v251 = vshrl.u32 %v250, 7
    %v252 = vsub.s32 0, %v251
    %v253 = vrot.slane %v247, %v252
    %v254 = vmul.f32 %v222, %v253
    %v255 = vlaneseq
    %v256 = vshrl.u32 %v255, 7
    %v257 = vsub.s32 0, %v256
    %v258 = vrot.slane %v249, %v257
    %v259 = vadd.f32 %v254, %v258
    %v260 = vmax.f32 %v259, 0.0
    %v261 = vlaneseq
    %v262 = vshrl.u32 %v261, 7
    %v263 = vsub.s32 0, %v262
    %v264 = vrot.slane %v32, %v263
    %v266 = vsel %vm111, %v260, 0
    %268 = vmatprep.subr.mxu0 0.0
    %269 = vmatpush1.msra.mxu0 0.0
    %270 = vmatprep.subr.mxu0 0.0
    %271 = vmatpush1.msra.mxu0 0.0
    %272 = vmatprep.subr.mxu0 0.0
    %273 = vmatpush1.msra.mxu0 0.0
    %274 = vmatprep.subr.mxu0 0.0
    %275 = vmatpush1.msra.mxu0 0.0
    %276 = vmatprep.subr.mxu0 0.0
    %277 = vmatpush1.msra.mxu0 0.0
    %278 = vmatprep.subr.mxu0 0.0
    %279 = vmatpush1.msra.mxu0 0.0
    %280 = vmatprep.subr.mxu0 0.0
    %281 = vmatpush1.msra.mxu0 0.0
    %282 = vmatprep.subr.mxu0 0.0
    %283 = vmatpush1.msra.mxu0 0.0
    %284 = vmatprep.subr.mxu0 0.0
    %285 = vmatpush1.msra.mxu0 0.0
    %286 = vmatprep.subr.mxu0 0.0
    %287 = vmatpush1.msra.mxu0 0.0
    %288 = vmatprep.subr.mxu0 0.0
    %289 = vmatpush1.msra.mxu0 0.0
    %290 = vmatprep.subr.mxu0 0.0
    %291 = vmatpush1.msra.mxu0 0.0
    %292 = vmatprep.subr.mxu0 0.0
    %293 = vmatpush1.msra.mxu0 %v25
    %294 = vmatprep.subr.mxu0 0.0
    %295 = vmatpush1.msra.mxu0 %v24
    %296 = vmatprep.subr.mxu0 0.0
    %297 = vmatpush1.msra.mxu0 %v23
    %298 = vmatprep.subr.mxu0 0.0
    %299 = vmatpush1.msra.mxu0 %v22
    %300 = vmatprep.subr.mxu0 0.0
    %301 = vmatpush2.msra.mxu0 0.0
    %302 = vmatprep.subr.mxu0 0.0
    %303 = vmatpush2.msra.mxu0 0.0
    %304 = vmatprep.subr.mxu0 0.0
    %305 = vmatpush2.msra.mxu0 0.0
    %306 = vmatprep.subr.mxu0 0.0
    %307 = vmatpush2.msra.mxu0 0.0
    %308 = vmatprep.subr.mxu0 0.0
    %309 = vmatpush2.msra.mxu0 0.0
    %310 = vmatprep.subr.mxu0 0.0
    %311 = vmatpush2.msra.mxu0 0.0
    %312 = vmatprep.subr.mxu0 0.0
    %313 = vmatpush2.msra.mxu0 0.0
    %314 = vmatprep.subr.mxu0 0.0
    %315 = vmatpush2.msra.mxu0 0.0
    %316 = vmatprep.subr.mxu0 0.0
    %317 = vmatpush2.msra.mxu0 0.0
    %318 = vmatprep.subr.mxu0 0.0
    %319 = vmatpush2.msra.mxu0 0.0
    %320 = vmatprep.subr.mxu0 0.0
    %321 = vmatpush2.msra.mxu0 0.0
    %322 = vmatprep.subr.mxu0 0.0
    %323 = vmatpush2.msra.mxu0 0.0
    %324 = vmatprep.subr.mxu0 0.0
    %325 = vmatpush2.msra.mxu0 0.0
    %326 = vmatprep.subr.mxu0 0.0
    %327 = vmatpush2.msra.mxu0 0.0
    %328 = vmatprep.subr.mxu0 0.0
    %329 = vmatpush2.msra.mxu0 0.0
    %330 = vmatprep.subr.mxu0 0.0
    %331 = vmatpush2.msra.mxu0 0.0
    %332 = vmatprep.mubr.f32.mxu0 0.0
    %333 = vmatmul.mubr.f32.gmra.mxu0 %v266
    %v334 = vpop.f32.mrf.mxu0
    %v335 = vadd.f32 %v264, %v334
    %v336 = vpop.f32.mrf.mxu0
    %337 = vdwg.mxu0
    %v338 = vsel %vm37, %v335, 0.0
    %v339 = vrot.slane %v338, 4
    %v340 = vadd.f32 %v338, %v339
    %v341 = vrot.slane %v340, 2
    %v342 = vadd.f32 %v340, %v341
    %v343 = vrot.slane %v342, 1
    %v344 = vadd.f32 %v342, %v343
    %v345 = vrcp.pop 8.0
    %v346 = vmul.f32 %v344, %v345
    %vm347 = vcmask 122880
    %348 = vst.msk [vmem:[#allocation2] sm:$0x1] %vm347, %v346
    // Predicated region
    $region14: #{tpu_custom_call.1} parent=1 // pred_check
      _
    $region15: #{tpu_custom_call.1} parent=1 // pred_check_branch
      %350 = sbr.rel (0) target = $region17
    $region16: #{tpu_custom_call.1} parent=1 // pred_region
      %s352 = ssub.s32 16, 16
      %353 = vsyncadd [#allocation3], %s352
      %s355 = sshll.u32 [#allocation2], 4
      %s356 = int_to_ptr.vmem [resolvable:$true] %s355
      %358 = dma.vmem_to_hbm [thread:$0]  %s356, 16, %s3, [#allocation3]
    $region17: #{tpu_custom_call.1} parent=1 // pred_fallthru
      _
    // Predicated region
    $region18: #{tpu_custom_call.1} parent=1 // pred_check
      _
    $region19: #{tpu_custom_call.1} parent=1 // pred_check_branch
      %360 = sbr.rel (0) target = $region21
    $region20: #{tpu_custom_call.1} parent=1 // pred_region
      %361 = dma.done [#allocation3], 16
    $region21: #{tpu_custom_call.1} parent=1 // pred_fallthru
      _
    %362 = vsyncpa [#allocation3], 1

</llo_original>
